<compile_context>
chip_gen: v5e
topology: v5e:2x2
jax: 0.10.0
libtpu: 0.0.40
codegen_flags: <defaults>
</compile_context>

<pallas_src>
import functools

import jax
import jax.numpy as jnp
from jax import lax
from jax.experimental import pallas as pl
from jax.experimental.pallas import tpu as pltpu


def _cdiv(a, b):
    return -(-a // b)


def _round_up(x, m):
    return _cdiv(x, m) * m


def _im2col_circular(x, *, H, W, Nb, K, dilation, masks):
    """Transposed im2col with per-batch circular padding.

    x: (C, L) f32 with L = H*Nb*W and lane order (h, batch, w).
    Returns (K*K*C, L): row block (kh*K + kw) holds, at output lane (h, b, w),
    the value x[c, b, (h+dh) mod H, (w+dw) mod W], dh = kh*dil - pad,
    dw = kw*dil - pad.
    """
    C, L = x.shape
    pad = dilation * (K - 1) // 2
    NbW = Nb * W

    # (a) dw-shifted, W-wrap-fixed variants (shared across all dh values).
    #     Both candidates stay inside the current row for the lanes where they
    #     are selected, so a flat roll over L is exact per batch element.
    variants = {}
    for kw in range(K):
        dw = kw * dilation - pad
        if dw in variants:
            continue
        if dw == 0:
            variants[dw] = x
            continue
        a = pltpu.roll(x, (-dw) % L, 1)                         # non-wrapping lanes
        b_shift = (W - dw) % L if dw > 0 else (-(dw + W)) % L   # row-wrapped lanes
        b = pltpu.roll(x, b_shift, 1)
        variants[dw] = jnp.where(masks[dw], b, a)

    # (b) H shift: pure flat roll by dh*Nb*W.  Exact (mod L wraps h mod H)
    #     because batch and w are the low-order lane digits -- no mask needed.
    blocks = []
    for kh in range(K):
        dh = kh * dilation - pad
        for kw in range(K):
            dw = kw * dilation - pad
            v = variants[dw]
            if dh == 0:
                blocks.append(v)
            else:
                blocks.append(pltpu.roll(v, (-dh * NbW) % L, 1))
    # Sublane-aligned concat (C is a multiple of 8 and blocks are f32).
    return jnp.concatenate(blocks, axis=0)                      # (K*K*C, L)


def _fused_block_kernel(x_ref, w1_ref, b1_ref, w2_ref, b2_ref, o_ref,
                        *, H, W, Nb, K, dilation):
    # x_ref : (Cin_p, L)  f32, L = H*Nb*W, lane order (h, batch, w)
    # w1_ref: (Cout_p, K*K*Cin_p) bf16    w2_ref: (Cout_p, K*K*Cout_p) bf16
    # b1_ref, b2_ref: (Cout_p, 1) f32
    # o_ref : (Cout_p, L) f32
    L = x_ref.shape[-1]
    pad = dilation * (K - 1) // 2

    # W-wrap lane masks, built ONCE and shared by both layers (JAX does not CSE
    # repeated iota/broadcasts, so hoist them out of the tap loops).
    w_pos = lax.broadcasted_iota(jnp.int32, (1, L), 1) % W
    masks = {}
    for kw in range(K):
        dw = kw * dilation - pad
        if dw > 0:
            masks[dw] = w_pos >= (W - dw)
        elif dw < 0:
            masks[dw] = w_pos < (-dw)

    im2col = functools.partial(_im2col_circular, H=H, W=W, Nb=Nb, K=K,
                               dilation=dilation, masks=masks)

    # ---- layer 1: one wide MXU matmul (bf16 x bf16 -> f32) + bias + ReLU ----
    col1 = im2col(x_ref[...]).astype(jnp.bfloat16)              # (K*K*Cin_p, L)
    h = jnp.dot(w1_ref[...], col1, preferred_element_type=jnp.float32)
    h = jnp.maximum(h + b1_ref[...], 0.0)                       # (Cout_p, L) f32

    # ---- layer 2: reads the VMEM-resident intermediate, no HBM round trip ----
    col2 = im2col(h).astype(jnp.bfloat16)                       # (K*K*Cout_p, L)
    y = jnp.dot(w2_ref[...], col2, preferred_element_type=jnp.float32)
    y = jnp.maximum(y + b2_ref[...], 0.0)                       # (Cout_p, L) f32

    o_ref[...] = y.astype(o_ref.dtype)


def basic_convolutional_block(x_nchw, params, *, dilation=1):
    """Forward pass of BasicConvolutionalBlock (default config, n_layers=2).

    x_nchw: (N, Cin, H, W) float32 (PyTorch NCHW convention)
    returns: (N, Cout, H, W) float32
    """
    (w1, b1), (w2, b2) = params            # weights in HWIO layout
    N, Cin, H, W = x_nchw.shape
    K = w1.shape[0]
    Cout = w1.shape[3]
    assert dilation * (K - 1) % 2 == 0, "padding must be an integer"
    pad = dilation * (K - 1) // 2
    assert pad < W and pad < H, "circular taps must wrap at most one period"

    # Pad channel counts to a multiple of 8 so sublane concats are aligned.
    # (Zero channels stay exactly zero through both layers: zero weights/bias.)
    Cin_p = _round_up(Cin, 8)
    Cout_p = _round_up(Cout, 8)

    # Batch blocking: Nb batch elements per grid step (folded into lanes), but
    # keep >= 2 grid steps when N >= 2 so v7x's two TensorCores share the work.
    # Nb is capped so per-step VMEM stays small on every generation.
    if N <= 1:
        G = 1
    else:
        G = max(2, _cdiv(N, 8))
    Nb = _cdiv(N, G)
    G = _cdiv(N, Nb)
    N_pad = G * Nb
    L = H * Nb * W                                             # lanes per step

    # Lay out x as (Cin_p, G, H, Nb, W) -> (Cin_p, G*L): channels on sublanes,
    # (h, batch, w) on lanes.  One-time tiny wrapper transpose = layout plumbing
    # that makes every in-kernel op (and the output store) lane-dense.
    x = x_nchw
    if N_pad != N:
        x = jnp.pad(x, ((0, N_pad - N), (0, 0), (0, 0), (0, 0)))
    if Cin_p != Cin:
        x = jnp.pad(x, ((0, 0), (0, Cin_p - Cin), (0, 0), (0, 0)))
    x = x.reshape(G, Nb, Cin_p, H, W)
    x = jnp.transpose(x, (2, 0, 3, 1, 4)).reshape(Cin_p, G * L)

    def to_mat(w_hwio, cin_p, cout_p):
        kh, kw, ci, co = w_hwio.shape
        wp = jnp.pad(w_hwio, ((0, 0), (0, 0), (0, cin_p - ci), (0, cout_p - co)))
        # row r = (kh*K + kw)*cin_p + c matches _im2col_circular's row order
        return wp.reshape(kh * kw * cin_p, cout_p).T.astype(jnp.bfloat16)

    w1m = to_mat(w1, Cin_p, Cout_p)                # (Cout_p, K*K*Cin_p) bf16
    w2m = to_mat(w2, Cout_p, Cout_p)               # (Cout_p, K*K*Cout_p) bf16
    b1p = jnp.pad(b1, (0, Cout_p - Cout)).reshape(Cout_p, 1).astype(jnp.float32)
    b2p = jnp.pad(b2, (0, Cout_p - Cout)).reshape(Cout_p, 1).astype(jnp.float32)

    kernel = functools.partial(_fused_block_kernel, H=H, W=W, Nb=Nb, K=K,
                               dilation=dilation)

    out = pl.pallas_call(
        kernel,
        out_shape=jax.ShapeDtypeStruct((Cout_p, G * L), jnp.float32),
        grid=(G,),
        in_specs=[
            pl.BlockSpec((Cin_p, L), lambda g: (0, g)),
            pl.BlockSpec((Cout_p, K * K * Cin_p), lambda g: (0, 0)),   # resident
            pl.BlockSpec((Cout_p, 1), lambda g: (0, 0)),               # resident
            pl.BlockSpec((Cout_p, K * K * Cout_p), lambda g: (0, 0)),  # resident
            pl.BlockSpec((Cout_p, 1), lambda g: (0, 0)),               # resident
        ],
        out_specs=pl.BlockSpec((Cout_p, L), lambda g: (0, g)),
        compiler_params=pltpu.CompilerParams(
            dimension_semantics=("parallel",)),
    )(x, w1m, b1p, w2m, b2p)

    # Undo the lane layout: (Cout_p, G, H, Nb, W) -> (N, Cout, H, W).
    out = out.reshape(Cout_p, G, H, Nb, W)
    out = jnp.transpose(out, (1, 3, 0, 2, 4)).reshape(N_pad, Cout_p, H, W)
    return out[:N, :Cout]


def init_params(key, in_channels, out_channels, kernel_size):
    """Deterministic parameter init (PyTorch-style uniform(-1/sqrt(fan_in), ...))."""
    k1, k2, k3, k4 = jax.random.split(key, 4)
    K = kernel_size

    fan1 = in_channels * K * K
    bound1 = 1.0 / (fan1 ** 0.5)
    w1_oihw = jax.random.uniform(k1, (out_channels, in_channels, K, K),
                                 jnp.float32, -bound1, bound1)
    b1 = jax.random.uniform(k2, (out_channels,), jnp.float32, -bound1, bound1)

    fan2 = out_channels * K * K
    bound2 = 1.0 / (fan2 ** 0.5)
    w2_oihw = jax.random.uniform(k3, (out_channels, out_channels, K, K),
                                 jnp.float32, -bound2, bound2)
    b2 = jax.random.uniform(k4, (out_channels,), jnp.float32, -bound2, bound2)

    # OIHW (torch) -> HWIO
    w1 = jnp.transpose(w1_oihw, (2, 3, 1, 0))
    w2 = jnp.transpose(w2_oihw, (2, 3, 1, 0))
    return (w1, b1), (w2, b2)


def _reference(x_nchw, params, *, dilation=1, quantize_bf16=False):
    """Pure-JAX reference (lax.conv on wrap-padded input).

    With quantize_bf16=True the conv operands are rounded to bf16 (accumulation
    stays f32), matching the kernel's MXU precision for a tight comparison.
    """
    (w1, b1), (w2, b2) = params
    K = w1.shape[0]
    pad = dilation * (K - 1) // 2

    def q(a):
        return a.astype(jnp.bfloat16).astype(jnp.float32) if quantize_bf16 else a

    def conv(x_nhwc, w, b):
        xp = jnp.pad(q(x_nhwc), ((0, 0), (pad, pad), (pad, pad), (0, 0)),
                     mode="wrap")
        y = lax.conv_general_dilated(
            xp, q(w), window_strides=(1, 1), padding="VALID",
            rhs_dilation=(dilation, dilation),
            dimension_numbers=("NHWC", "HWIO", "NHWC"))
        return jnp.maximum(y + b[None, None, None, :], 0.0)

    x = jnp.transpose(x_nchw, (0, 2, 3, 1))
    y = conv(conv(x, w1, b1), w2, b2)
    return jnp.transpose(y, (0, 3, 1, 2))


if __name__ == "__main__":
    in_channels, out_channels, kernel_size, dilation = 4, 8, 3, 1
    N, H, W = 2, 16, 16

    key = jax.random.PRNGKey(0)
    kp, kx = jax.random.split(key)
    params = init_params(kp, in_channels, out_channels, kernel_size)
    x = jax.random.normal(kx, (N, in_channels, H, W), jnp.float32)

    out = basic_convolutional_block(x, params, dilation=dilation)
    out = jax.block_until_ready(out)
    assert out.shape == (N, out_channels, H, W)

    # Tight check against a reference with matching bf16 operand quantization
    # (both accumulate in f32; only summation order differs).
    ref_q = _reference(x, params, dilation=dilation, quantize_bf16=True)
    assert jnp.allclose(out, ref_q, atol=5e-3, rtol=5e-3), \
        "mismatch vs bf16-operand reference"
    # Loose sanity check against the pure-f32 module semantics.
    ref = _reference(x, params, dilation=dilation, quantize_bf16=False)
    assert jnp.allclose(out, ref, atol=1e-1, rtol=1e-1), "mismatch vs f32 reference"

    # Extra check: exercise the batch-folded (Nb > 1, padded batch) path.
    x5 = jax.random.normal(jax.random.PRNGKey(1), (5, in_channels, H, W),
                           jnp.float32)
    out5 = jax.block_until_ready(
        basic_convolutional_block(x5, params, dilation=dilation))
    ref5_q = _reference(x5, params, dilation=dilation, quantize_bf16=True)
    assert out5.shape == (5, out_channels, H, W)
    assert jnp.allclose(out5, ref5_q, atol=5e-3, rtol=5e-3), "mismatch (Nb>1 path)"

    print("KERNEL_OK")
</pallas_src>

<mosaic_0001>
module attributes {stable_mosaic.version = 11 : i64} {
  func.func @_fused_block_kernel(%arg0: i32, %arg1: memref<8x256xf32, #tpu.memory_space<vmem>>, %arg2: memref<8x72xbf16, #tpu.memory_space<vmem>>, %arg3: memref<8x1xf32, #tpu.memory_space<vmem>>, %arg4: memref<8x72xbf16, #tpu.memory_space<vmem>>, %arg5: memref<8x1xf32, #tpu.memory_space<vmem>>, %arg6: memref<8x256xf32, #tpu.memory_space<vmem>>) attributes {dimension_semantics = [#tpu.dimension_semantics<parallel>], iteration_bounds = array<i64: 2>, scalar_prefetch = 0 : i64, scratch_operands = 0 : i64, tpu.core_type = #tpu.core_type<tc>, window_params = [{transform_indices = @transform_0, window_bounds = array<i64: 8, 256>}, {pipeline_mode = #tpu.pipeline_mode<synchronous>, transform_indices = @transform_1, window_bounds = array<i64: 8, 72>}, {pipeline_mode = #tpu.pipeline_mode<synchronous>, transform_indices = @transform_2, window_bounds = array<i64: 8, 1>}, {pipeline_mode = #tpu.pipeline_mode<synchronous>, transform_indices = @transform_3, window_bounds = array<i64: 8, 72>}, {pipeline_mode = #tpu.pipeline_mode<synchronous>, transform_indices = @transform_4, window_bounds = array<i64: 8, 1>}, {transform_indices = @transform_5, window_bounds = array<i64: 8, 256>}]} {
    %0 = tpu.iota {dimensions = array<i32: 1>} : vector<1x256xi32>
    %c16_i32 = arith.constant 16 : i32
    %c0_i32 = arith.constant 0 : i32
    %1 = arith.cmpi eq, %c16_i32, %c0_i32 : i32
    %c1_i32 = arith.constant 1 : i32
    %2 = arith.select %1, %c1_i32, %c16_i32 : i32
    %3 = vector.broadcast %2 : i32 to vector<1x256xi32>
    %4 = arith.remsi %0, %3 : vector<1x256xi32>
    %c0_i32_0 = arith.constant 0 : i32
    %5 = vector.broadcast %c0_i32_0 : i32 to vector<1x256xi32>
    %6 = arith.cmpi ne, %4, %5 : vector<1x256xi32>
    %c0_i32_1 = arith.constant 0 : i32
    %7 = vector.broadcast %c0_i32_1 : i32 to vector<1x256xi32>
    %8 = arith.cmpi slt, %4, %7 : vector<1x256xi32>
    %c0_i32_2 = arith.constant 0 : i32
    %9 = arith.cmpi slt, %2, %c0_i32_2 : i32
    %10 = vector.broadcast %9 : i1 to vector<1x256xi1>
    %11 = vector.broadcast %10 : vector<1x256xi1> to vector<1x256xi1>
    %12 = arith.xori %8, %11 : vector<1x256xi1>
    %13 = arith.andi %12, %6 : vector<1x256xi1>
    %14 = vector.broadcast %2 : i32 to vector<1x256xi32>
    %15 = arith.addi %4, %14 : vector<1x256xi32>
    %16 = arith.select %13, %15, %4 : vector<1x256xi1>, vector<1x256xi32>
    %c1_i32_3 = arith.constant 1 : i32
    %17 = vector.broadcast %c1_i32_3 : i32 to vector<1x256xi32>
    %18 = arith.cmpi slt, %16, %17 : vector<1x256xi32>
    %c15_i32 = arith.constant 15 : i32
    %19 = vector.broadcast %c15_i32 : i32 to vector<1x256xi32>
    %20 = arith.cmpi sge, %16, %19 : vector<1x256xi32>
    %c0 = arith.constant 0 : index
    %c0_4 = arith.constant 0 : index
    %21 = vector.load %arg1[%c0, %c0_4] : memref<8x256xf32, #tpu.memory_space<vmem>>, vector<8x256xf32>
    %c1_i32_5 = arith.constant 1 : i32
    %22 = tpu.dynamic_rotate %21 by %c1_i32_5 dim 1 : vector<8x256xf32>, i32 -> vector<8x256xf32>
    %c241_i32 = arith.constant 241 : i32
    %23 = tpu.dynamic_rotate %21 by %c241_i32 dim 1 : vector<8x256xf32>, i32 -> vector<8x256xf32>
    %24 = vector.shape_cast %18 : vector<1x256xi1> to vector<1x256xi1>
    %25 = vector.broadcast %24 : vector<1x256xi1> to vector<8x256xi1>
    %26 = arith.select %25, %23, %22 : vector<8x256xi1>, vector<8x256xf32>
    %c255_i32 = arith.constant 255 : i32
    %27 = tpu.dynamic_rotate %21 by %c255_i32 dim 1 : vector<8x256xf32>, i32 -> vector<8x256xf32>
    %c15_i32_6 = arith.constant 15 : i32
    %28 = tpu.dynamic_rotate %21 by %c15_i32_6 dim 1 : vector<8x256xf32>, i32 -> vector<8x256xf32>
    %29 = vector.shape_cast %20 : vector<1x256xi1> to vector<1x256xi1>
    %30 = vector.broadcast %29 : vector<1x256xi1> to vector<8x256xi1>
    %31 = arith.select %30, %28, %27 : vector<8x256xi1>, vector<8x256xf32>
    %c16_i32_7 = arith.constant 16 : i32
    %32 = tpu.dynamic_rotate %26 by %c16_i32_7 dim 1 : vector<8x256xf32>, i32 -> vector<8x256xf32>
    %c16_i32_8 = arith.constant 16 : i32
    %33 = tpu.dynamic_rotate %21 by %c16_i32_8 dim 1 : vector<8x256xf32>, i32 -> vector<8x256xf32>
    %c16_i32_9 = arith.constant 16 : i32
    %34 = tpu.dynamic_rotate %31 by %c16_i32_9 dim 1 : vector<8x256xf32>, i32 -> vector<8x256xf32>
    %c240_i32 = arith.constant 240 : i32
    %35 = tpu.dynamic_rotate %26 by %c240_i32 dim 1 : vector<8x256xf32>, i32 -> vector<8x256xf32>
    %c240_i32_10 = arith.constant 240 : i32
    %36 = tpu.dynamic_rotate %21 by %c240_i32_10 dim 1 : vector<8x256xf32>, i32 -> vector<8x256xf32>
    %c240_i32_11 = arith.constant 240 : i32
    %37 = tpu.dynamic_rotate %31 by %c240_i32_11 dim 1 : vector<8x256xf32>, i32 -> vector<8x256xf32>
    %38 = tpu.concatenate %32, %33, %34, %26, %21, %31, %35, %36, %37 in 0 : vector<8x256xf32>, vector<8x256xf32>, vector<8x256xf32>, vector<8x256xf32>, vector<8x256xf32>, vector<8x256xf32>, vector<8x256xf32>, vector<8x256xf32>, vector<8x256xf32> -> vector<72x256xf32>
    %39 = arith.truncf %38 : vector<72x256xf32> to vector<72x256xbf16>
    %c0_12 = arith.constant 0 : index
    %c0_13 = arith.constant 0 : index
    %40 = vector.load %arg2[%c0_12, %c0_13] : memref<8x72xbf16, #tpu.memory_space<vmem>>, vector<8x72xbf16>
    %cst = arith.constant dense<0.000000e+00> : vector<8x256xf32>
    %41 = tpu.matmul %40, %39, %cst {dimension_numbers = #tpu.dot_dimension_numbers<[1], [0], [0], [1], [0, 0, 1, 1], [], []>} : vector<8x72xbf16>, vector<72x256xbf16>, vector<8x256xf32> -> vector<8x256xf32>
    %c0_14 = arith.constant 0 : index
    %c0_15 = arith.constant 0 : index
    %42 = vector.load %arg3[%c0_14, %c0_15] : memref<8x1xf32, #tpu.memory_space<vmem>>, vector<8x1xf32>
    %43 = vector.broadcast %42 : vector<8x1xf32> to vector<8x256xf32>
    %44 = arith.addf %41, %43 : vector<8x256xf32>
    %cst_16 = arith.constant 0.000000e+00 : f32
    %45 = vector.broadcast %cst_16 : f32 to vector<8x256xf32>
    %46 = arith.maximumf %44, %45 : vector<8x256xf32>
    %c1_i32_17 = arith.constant 1 : i32
    %47 = tpu.dynamic_rotate %46 by %c1_i32_17 dim 1 : vector<8x256xf32>, i32 -> vector<8x256xf32>
    %c241_i32_18 = arith.constant 241 : i32
    %48 = tpu.dynamic_rotate %46 by %c241_i32_18 dim 1 : vector<8x256xf32>, i32 -> vector<8x256xf32>
    %49 = vector.shape_cast %18 : vector<1x256xi1> to vector<1x256xi1>
    %50 = vector.broadcast %49 : vector<1x256xi1> to vector<8x256xi1>
    %51 = arith.select %50, %48, %47 : vector<8x256xi1>, vector<8x256xf32>
    %c255_i32_19 = arith.constant 255 : i32
    %52 = tpu.dynamic_rotate %46 by %c255_i32_19 dim 1 : vector<8x256xf32>, i32 -> vector<8x256xf32>
    %c15_i32_20 = arith.constant 15 : i32
    %53 = tpu.dynamic_rotate %46 by %c15_i32_20 dim 1 : vector<8x256xf32>, i32 -> vector<8x256xf32>
    %54 = vector.shape_cast %20 : vector<1x256xi1> to vector<1x256xi1>
    %55 = vector.broadcast %54 : vector<1x256xi1> to vector<8x256xi1>
    %56 = arith.select %55, %53, %52 : vector<8x256xi1>, vector<8x256xf32>
    %c16_i32_21 = arith.constant 16 : i32
    %57 = tpu.dynamic_rotate %51 by %c16_i32_21 dim 1 : vector<8x256xf32>, i32 -> vector<8x256xf32>
    %c16_i32_22 = arith.constant 16 : i32
    %58 = tpu.dynamic_rotate %46 by %c16_i32_22 dim 1 : vector<8x256xf32>, i32 -> vector<8x256xf32>
    %c16_i32_23 = arith.constant 16 : i32
    %59 = tpu.dynamic_rotate %56 by %c16_i32_23 dim 1 : vector<8x256xf32>, i32 -> vector<8x256xf32>
    %c240_i32_24 = arith.constant 240 : i32
    %60 = tpu.dynamic_rotate %51 by %c240_i32_24 dim 1 : vector<8x256xf32>, i32 -> vector<8x256xf32>
    %c240_i32_25 = arith.constant 240 : i32
    %61 = tpu.dynamic_rotate %46 by %c240_i32_25 dim 1 : vector<8x256xf32>, i32 -> vector<8x256xf32>
    %c240_i32_26 = arith.constant 240 : i32
    %62 = tpu.dynamic_rotate %56 by %c240_i32_26 dim 1 : vector<8x256xf32>, i32 -> vector<8x256xf32>
    %63 = tpu.concatenate %57, %58, %59, %51, %46, %56, %60, %61, %62 in 0 : vector<8x256xf32>, vector<8x256xf32>, vector<8x256xf32>, vector<8x256xf32>, vector<8x256xf32>, vector<8x256xf32>, vector<8x256xf32>, vector<8x256xf32>, vector<8x256xf32> -> vector<72x256xf32>
    %64 = arith.truncf %63 : vector<72x256xf32> to vector<72x256xbf16>
    %c0_27 = arith.constant 0 : index
    %c0_28 = arith.constant 0 : index
    %65 = vector.load %arg4[%c0_27, %c0_28] : memref<8x72xbf16, #tpu.memory_space<vmem>>, vector<8x72xbf16>
    %cst_29 = arith.constant dense<0.000000e+00> : vector<8x256xf32>
    %66 = tpu.matmul %65, %64, %cst_29 {dimension_numbers = #tpu.dot_dimension_numbers<[1], [0], [0], [1], [0, 0, 1, 1], [], []>} : vector<8x72xbf16>, vector<72x256xbf16>, vector<8x256xf32> -> vector<8x256xf32>
    %c0_30 = arith.constant 0 : index
    %c0_31 = arith.constant 0 : index
    %67 = vector.load %arg5[%c0_30, %c0_31] : memref<8x1xf32, #tpu.memory_space<vmem>>, vector<8x1xf32>
    %68 = vector.broadcast %67 : vector<8x1xf32> to vector<8x256xf32>
    %69 = arith.addf %66, %68 : vector<8x256xf32>
    %cst_32 = arith.constant 0.000000e+00 : f32
    %70 = vector.broadcast %cst_32 : f32 to vector<8x256xf32>
    %71 = arith.maximumf %69, %70 : vector<8x256xf32>
    %c0_33 = arith.constant 0 : index
    %c0_34 = arith.constant 0 : index
    %72 = vector.load %arg6[%c0_33, %c0_34] : memref<8x256xf32, #tpu.memory_space<vmem>>, vector<8x256xf32>
    tpu.vector_store %arg6[%c0_33, %c0_34], %71 {strides = array<i32>} : memref<8x256xf32, #tpu.memory_space<vmem>>, vector<8x256xf32>,
    return
  }
  func.func @transform_0(%arg0: i32) -> (i32, i32) {
    %c0_i32 = arith.constant 0 : i32
    %c0_i32_0 = arith.constant 0 : i32
    return %c0_i32, %arg0 : i32, i32
  }
  func.func @transform_1(%arg0: i32) -> (i32, i32) {
    %c0_i32 = arith.constant 0 : i32
    %c0_i32_0 = arith.constant 0 : i32
    %c0_i32_1 = arith.constant 0 : i32
    return %c0_i32, %c0_i32_0 : i32, i32
  }
  func.func @transform_2(%arg0: i32) -> (i32, i32) {
    %c0_i32 = arith.constant 0 : i32
    %c0_i32_0 = arith.constant 0 : i32
    %c0_i32_1 = arith.constant 0 : i32
    return %c0_i32, %c0_i32_0 : i32, i32
  }
  func.func @transform_3(%arg0: i32) -> (i32, i32) {
    %c0_i32 = arith.constant 0 : i32
    %c0_i32_0 = arith.constant 0 : i32
    %c0_i32_1 = arith.constant 0 : i32
    return %c0_i32, %c0_i32_0 : i32, i32
  }
  func.func @transform_4(%arg0: i32) -> (i32, i32) {
    %c0_i32 = arith.constant 0 : i32
    %c0_i32_0 = arith.constant 0 : i32
    %c0_i32_1 = arith.constant 0 : i32
    return %c0_i32, %c0_i32_0 : i32, i32
  }
  func.func @transform_5(%arg0: i32) -> (i32, i32) {
    %c0_i32 = arith.constant 0 : i32
    %c0_i32_0 = arith.constant 0 : i32
    return %c0_i32, %arg0 : i32, i32
  }
}

</mosaic_0001>

<llo_original>
// kernel: tpu_custom_call.1
$region0: #{tpu_custom_call.1}
  #allocation0 [shape = 'u32[]', space=smem, size = 0x4, offset = 0x4, fixed_abs, tag = 'smem constant byte address 0x4 - core index']
  #allocation1 [shape = 'u32[72,128]{1,0:T(1,128)}', space=vmem, size = 0x9000, scoped, tag = 'internal scratch']
  %s0 = inlined_call_operand.hbm [shape: f32[8,512], index: 0, kind: input, shape index: {}]
  %s1 = inlined_call_operand.vmem [shape: bf16[8,72], index: 1, kind: input, shape index: {}]
  %s2 = inlined_call_operand.vmem [shape: f32[8,1], index: 2, kind: input, shape index: {}]
  %s3 = inlined_call_operand.vmem [shape: bf16[8,72], index: 3, kind: input, shape index: {}]
  %s4 = inlined_call_operand.vmem [shape: f32[8,1], index: 4, kind: input, shape index: {}]
  %s5 = inlined_call_operand.hbm [shape: f32[8,512], index: 5, kind: output, shape index: {}]
  %s6 = sld [smem:[#allocation0]]
  $region57: #{tpu_custom_call.1} parent=0
    _
  %s8 = ssub.s32 1, %s6
  %s9 = scalar_select 0, %s8, %s6
  $region1: #{tpu_custom_call.1} parent=0
    #allocation2 [shape = 'u8[16384]{0}', space=vmem, size = 0x4000, scoped, tag = 'input window, operand 0']
    #allocation3 [shape = 's32[2]{0}', space=sflag, size = 0x8, scoped, tag = 'scoped memory for tpu_custom_call.1']
    #allocation4 [shape = 's32[2]{0}', space=sflag, size = 0x8, scoped, tag = 'scoped memory for tpu_custom_call.1']
    #allocation5 [shape = 'u8[16384]{0}', space=vmem, size = 0x4000, scoped, tag = 'output window, operand 0']
    %10 = vsyncpa [#allocation3], 0
    %s11 = scalar_lea.sflag [#allocation3], 1
    %12 = vsyncpa %s11, 0
    %13 = vsyncpa [#allocation4], 0
    %s14 = scalar_lea.sflag [#allocation4], 1
    %15 = vsyncpa %s14, 0
    loop: start=0, step=1, limit=4
    $region2: #{tpu_custom_call.1} parent=1 // loop_pre_header
      _
    $region3: #{tpu_custom_call.1} parent=1 // loop_header
      %s17 = sphi 0, %s21
      %p18 = scmp.ge.s32.totalorder %s17, 4
      %s27 = sphi 0, %s29
      %s30 = sphi 0, %s27
      %s31 = sphi 0, %s30
      %s47 = sphi 0, %s31
      %s51 = sphi 0, %s51
      %s53 = sphi 0, %s51
      %s54 = sphi 0, %s53
      %s68 = sphi 0, %s54
      %s72 = sphi 0, %s72
      %s74 = sphi 0, %s72
      %s75 = sphi 0, %s74
      %s89 = sphi 0, %s75
      %s93 = sphi 0, %s93
      %s95 = sphi 0, %s93
      %s96 = sphi 0, %s95
      %s110 = sphi 0, %s96
      %s114 = sphi 0, %s114
      %s116 = sphi 0, %s114
      %s117 = sphi 0, %s116
      %s131 = sphi 0, %s117
      %s137 = sphi 0, %s139
      %s140 = sphi 0, %s137
      %s141 = sphi 0, %s140
      %s157 = sphi 0, %s141
    $region4: #{tpu_custom_call.1} parent=1 // loop_header_branch
      %20 = sbr.rel (%p18) target = $region8
    $region5: #{tpu_custom_call.1} parent=1 // loop_body
      %s22 = ssub.s32 %s17, 1
      %s23 = ssub.s32 %s17, 2
      %s24 = sadd.s32 %s17, 1
      %s25 = ssub.s32 %s17, %s24
      %p26 = scmp.eq.s32.totalorder %s25, 0
      %s28 = sadd.s32 %s27, 1
      %s29 = scalar_select %p26, %s27, %s28
      %p32 = pneg %p26
      %p33 = scmp.eq.s32.totalorder %s17, 1
      %p34 = por %p32, %p33
      %p35 = scmp.ne.s32.totalorder %s27, %s30
      %p36 = scmp.eq.s32.totalorder %s17, 0
      %p37 = por %p35, %p36
      %p38 = scmp.ne.s32.totalorder %s27, %s30
      %p39 = scmp.eq.s32.totalorder %s22, 1
      %p40 = por %p38, %p39
      %p41 = scmp.ne.s32.totalorder %s30, %s31
      %p42 = scmp.eq.s32.totalorder %s22, 0
      %p43 = por %p41, %p42
      %p44 = scmp.ne.s32.totalorder %s30, %s31
      %p45 = scmp.eq.s32.totalorder %s23, 1
      %p46 = por %p44, %p45
      %p48 = scmp.ne.s32.totalorder %s31, %s47
      %p49 = scmp.eq.s32.totalorder %s23, 0
      %p50 = por %p48, %p49
      %s52 = sadd.s32 %s51, 1
      %p55 = scmp.eq.s32.totalorder %s17, 1
      %p56 = scmp.ne.s32.totalorder %s51, %s53
      %p57 = scmp.eq.s32.totalorder %s17, 0
      %p58 = por %p56, %p57
      %p59 = scmp.ne.s32.totalorder %s51, %s53
      %p60 = scmp.eq.s32.totalorder %s22, 1
      %p61 = por %p59, %p60
      %p62 = scmp.ne.s32.totalorder %s53, %s54
      %p63 = scmp.eq.s32.totalorder %s22, 0
      %p64 = por %p62, %p63
      %p65 = scmp.ne.s32.totalorder %s53, %s54
      %p66 = scmp.eq.s32.totalorder %s23, 1
      %p67 = por %p65, %p66
      %p69 = scmp.ne.s32.totalorder %s54, %s68
      %p70 = scmp.eq.s32.totalorder %s23, 0
      %p71 = por %p69, %p70
      %s73 = sadd.s32 %s72, 1
      %p76 = scmp.eq.s32.totalorder %s17, 1
      %p77 = scmp.ne.s32.totalorder %s72, %s74
      %p78 = scmp.eq.s32.totalorder %s17, 0
      %p79 = por %p77, %p78
      %p80 = scmp.ne.s32.totalorder %s72, %s74
      %p81 = scmp.eq.s32.totalorder %s22, 1
      %p82 = por %p80, %p81
      %p83 = scmp.ne.s32.totalorder %s74, %s75
      %p84 = scmp.eq.s32.totalorder %s22, 0
      %p85 = por %p83, %p84
      %p86 = scmp.ne.s32.totalorder %s74, %s75
      %p87 = scmp.eq.s32.totalorder %s23, 1
      %p88 = por %p86, %p87
      %p90 = scmp.ne.s32.totalorder %s75, %s89
      %p91 = scmp.eq.s32.totalorder %s23, 0
      %p92 = por %p90, %p91
      %s94 = sadd.s32 %s93, 1
      %p97 = scmp.eq.s32.totalorder %s17, 1
      %p98 = scmp.ne.s32.totalorder %s93, %s95
      %p99 = scmp.eq.s32.totalorder %s17, 0
      %p100 = por %p98, %p99
      %p101 = scmp.ne.s32.totalorder %s93, %s95
      %p102 = scmp.eq.s32.totalorder %s22, 1
      %p103 = por %p101, %p102
      %p104 = scmp.ne.s32.totalorder %s95, %s96
      %p105 = scmp.eq.s32.totalorder %s22, 0
      %p106 = por %p104, %p105
      %p107 = scmp.ne.s32.totalorder %s95, %s96
      %p108 = scmp.eq.s32.totalorder %s23, 1
      %p109 = por %p107, %p108
      %p111 = scmp.ne.s32.totalorder %s96, %s110
      %p112 = scmp.eq.s32.totalorder %s23, 0
      %p113 = por %p111, %p112
      %s115 = sadd.s32 %s114, 1
      %p118 = scmp.eq.s32.totalorder %s17, 1
      %p119 = scmp.ne.s32.totalorder %s114, %s116
      %p120 = scmp.eq.s32.totalorder %s17, 0
      %p121 = por %p119, %p120
      %p122 = scmp.ne.s32.totalorder %s114, %s116
      %p123 = scmp.eq.s32.totalorder %s22, 1
      %p124 = por %p122, %p123
      %p125 = scmp.ne.s32.totalorder %s116, %s117
      %p126 = scmp.eq.s32.totalorder %s22, 0
      %p127 = por %p125, %p126
      %p128 = scmp.ne.s32.totalorder %s116, %s117
      %p129 = scmp.eq.s32.totalorder %s23, 1
      %p130 = por %p128, %p129
      %p132 = scmp.ne.s32.totalorder %s117, %s131
      %p133 = scmp.eq.s32.totalorder %s23, 0
      %p134 = por %p132, %p133
      %s135 = ssub.s32 %s17, %s24
      %p136 = scmp.eq.s32.totalorder %s135, 0
      %s138 = sadd.s32 %s137, 1
      %s139 = scalar_select %p136, %s137, %s138
      %p142 = pneg %p136
      %p143 = scmp.eq.s32.totalorder %s17, 1
      %p144 = por %p142, %p143
      %p145 = scmp.ne.s32.totalorder %s137, %s140
      %p146 = scmp.eq.s32.totalorder %s17, 0
      %p147 = por %p145, %p146
      %p148 = scmp.ne.s32.totalorder %s137, %s140
      %p149 = scmp.eq.s32.totalorder %s22, 1
      %p150 = por %p148, %p149
      %p151 = scmp.ne.s32.totalorder %s140, %s141
      %p152 = scmp.eq.s32.totalorder %s22, 0
      %p153 = por %p151, %p152
      %p154 = scmp.ne.s32.totalorder %s140, %s141
      %p155 = scmp.eq.s32.totalorder %s23, 1
      %p156 = por %p154, %p155
      %p158 = scmp.ne.s32.totalorder %s141, %s157
      %p159 = scmp.eq.s32.totalorder %s23, 0
      %p160 = por %p158, %p159
      %p161 = scmp.le.s32.totalorder 1, %s17
      %p162 = scmp.lt.s32.totalorder %s17, 3
      %p163 = pnand %p161, %p162
      %p164 = pneg %p163
      // Predicated region
      $region9: #{tpu_custom_call.1} parent=5 // pred_check
        _
      $region10: #{tpu_custom_call.1} parent=5 // pred_check_branch
        %166 = sbr.rel (%p163) target = $region12
      $region11: #{tpu_custom_call.1} parent=5 // pred_region
        %s167 = ssub.s32 %s17, 1
        // Predicated region
        $region13: #{tpu_custom_call.1} parent=11 // pred_check
          %p168 = pneg %p64
        $region14: #{tpu_custom_call.1} parent=11 // pred_check_branch
          %170 = sbr.rel (%p168) target = $region16
        $region15: #{tpu_custom_call.1} parent=11 // pred_region
          _
        $region16: #{tpu_custom_call.1} parent=11 // pred_fallthru
          _
        // Predicated region
        $region17: #{tpu_custom_call.1} parent=11 // pred_check
          %p171 = pneg %p85
        $region18: #{tpu_custom_call.1} parent=11 // pred_check_branch
          %173 = sbr.rel (%p171) target = $region20
        $region19: #{tpu_custom_call.1} parent=11 // pred_region
          _
        $region20: #{tpu_custom_call.1} parent=11 // pred_fallthru
          _
        // Predicated region
        $region21: #{tpu_custom_call.1} parent=11 // pred_check
          %p174 = pneg %p106
        $region22: #{tpu_custom_call.1} parent=11 // pred_check_branch
          %176 = sbr.rel (%p174) target = $region24
        $region23: #{tpu_custom_call.1} parent=11 // pred_region
          _
        $region24: #{tpu_custom_call.1} parent=11 // pred_fallthru
          _
        // Predicated region
        $region25: #{tpu_custom_call.1} parent=11 // pred_check
          %p177 = pneg %p127
        $region26: #{tpu_custom_call.1} parent=11 // pred_check_branch
          %179 = sbr.rel (%p177) target = $region28
        $region27: #{tpu_custom_call.1} parent=11 // pred_region
          _
        $region28: #{tpu_custom_call.1} parent=11 // pred_fallthru
          _
      $region12: #{tpu_custom_call.1} parent=5 // pred_fallthru
        _
      %p180 = scmp.lt.s32.totalorder %s17, 2
      // Predicated region
      $region29: #{tpu_custom_call.1} parent=5 // pred_check
        %p181 = pneg %p180
      $region30: #{tpu_custom_call.1} parent=5 // pred_check_branch
        %183 = sbr.rel (%p181) target = $region32
      $region31: #{tpu_custom_call.1} parent=5 // pred_region
        // Predicated region
        $region33: #{tpu_custom_call.1} parent=31 // pred_check
          %p184 = pneg %p37
        $region34: #{tpu_custom_call.1} parent=31 // pred_check_branch
          %186 = sbr.rel (%p184) target = $region36
        $region35: #{tpu_custom_call.1} parent=31 // pred_region
          %s187 = sand.u32 %s27, 1
          %s188 = scalar_lea.sflag [#allocation3], %s187
          %s189 = sand.u32 %s27, 1
          %s190 = smul.addr %s189, 16
          %s191 = scalar_lea.vmem [#allocation2], %s190
          %s192 = smul.u32 2, %s17
          %194 = vsyncadd %s188, 0
          %s195 = smul.addr %s192, 8
          %s196 = scalar_lea.hbm %s0, %s195
          %s198 = sshll.u32 %s196, 4
          %s199 = int_to_ptr.hbm [resolvable:$true] %s198
          %s200 = sshll.u32 %s191, 4
          %s201 = int_to_ptr.vmem [resolvable:$true] %s200
          %203 = dma.hbm_to_vmem [thread:$0]  %s199, 256, %s201, %s188
        $region36: #{tpu_custom_call.1} parent=31 // pred_fallthru
          _
      $region32: #{tpu_custom_call.1} parent=5 // pred_fallthru
        _
      %p204 = scmp.le.s32.totalorder 1, %s17
      %p205 = scmp.lt.s32.totalorder %s17, 3
      %p206 = pnand %p204, %p205
      %p207 = pneg %p206
      // Predicated region
      $region37: #{tpu_custom_call.1} parent=5 // pred_check
        _
      $region38: #{tpu_custom_call.1} parent=5 // pred_check_branch
        %209 = sbr.rel (%p206) target = $region40
      $region39: #{tpu_custom_call.1} parent=5 // pred_region
        %s210 = ssub.s32 %s17, 1
        %s211 = sand.u32 %s30, 1
        %s212 = scalar_lea.sflag [#allocation3], %s211
        %s213 = sand.u32 %s30, 1
        %s214 = smul.addr %s213, 16
        %s215 = scalar_lea.vmem [#allocation2], %s214
        // Predicated region
        $region41: #{tpu_custom_call.1} parent=39 // pred_check
          %p216 = pneg %p43
        $region42: #{tpu_custom_call.1} parent=39 // pred_check_branch
          %218 = sbr.rel (%p216) target = $region44
        $region43: #{tpu_custom_call.1} parent=39 // pred_region
          %220 = dma.done %s212, 256
        $region44: #{tpu_custom_call.1} parent=39 // pred_fallthru
          _
        %s221 = sand.u32 %s30, 1
        %s222 = scalar_lea.sflag [#allocation3], %s221
        %s223 = sand.u32 %s30, 1
        %s224 = smul.addr %s223, 16
        %s225 = scalar_lea.vmem [#allocation2], %s224
        %p226 = pneg %p43
        %p227 = pneg %p40
        %p228 = pneg %p64
        %p229 = pneg %p61
        %p230 = pneg %p85
        %p231 = pneg %p82
        %p232 = pneg %p106
        %p233 = pneg %p103
        %p234 = pneg %p127
        %p235 = pneg %p124
        %p236 = pneg %p153
        %p237 = pneg %p150
        %s238 = sand.u32 %s140, 1
        %s239 = scalar_lea.sflag [#allocation4], %s238
        %s240 = sand.u32 %s140, 1
        %s241 = smul.addr %s240, 16
        %s242 = scalar_lea.vmem [#allocation5], %s241
        %s243 = smul.u32 2, %s22
        %s244 = smul.u32 2, %s22
        %v246 = vlaneseq
        %v247 = vand.u32 %v246, 127
        %v248 = vadd.s32 %v247, 128
        %vm249 = vcmp.lt.s32.totalorder %v247, 0
        %v250 = vsub.s32 0, %v247
        %v251 = vsel %vm249, %v250, %v247
        %v252 = vshrl.u32 %v251, 4
        %v253 = vand.u32 %v251, 15
        %v254 = vsub.s32 0, %v253
        %v255 = vsel %vm249, %v254, %v253
        %vm256 = vcmp.lt.s32.totalorder %v248, 0
        %v257 = vsub.s32 0, %v248
        %v258 = vsel %vm256, %v257, %v248
        %v259 = vshrl.u32 %v258, 4
        %v260 = vand.u32 %v258, 15
        %v261 = vsub.s32 0, %v260
        %v262 = vsel %vm256, %v261, %v260
        %vm263 = vcmp.ne.s32.totalorder %v255, 0
        %vm264 = vcmp.ne.s32.totalorder %v262, 0
        %vm265 = vcmp.lt.s32.totalorder %v255, 0
        %vm266 = vcmp.lt.s32.totalorder %v262, 0
        %vm267 = vmand %vm265, %vm263
        %vm268 = vmand %vm266, %vm264
        %v269 = vadd.s32 %v255, 16
        %v270 = vadd.s32 %v262, 16
        %v271 = vsel %vm267, %v269, %v255
        %v272 = vsel %vm268, %v270, %v262
        %vm273 = vcmp.lt.s32.totalorder %v271, 1
        %vm274 = vcmp.lt.s32.totalorder %v272, 1
        %vm275 = vcmp.ge.s32.totalorder %v271, 15
        %vm276 = vcmp.ge.s32.totalorder %v272, 15
        %v277 = vld [vmem:[%s215] sm:$0xff]
        %v278 = vld [vmem:[%s215 + $0x8] sm:$0xff]
        %279 = vrot.lane.b32.xlu0 %v277, 1
        %v280 = vpop.permute.xlu0 %279
        %281 = vrot.lane.b32.xlu0 %v278, 1
        %v282 = vpop.permute.xlu0 %281
        %vm283 = vcmp.lt.s32.totalorder %v247, 1
        %v284 = vsel %vm283, %v280, %v282
        %v285 = vsel %vm283, %v282, %v280
        %286 = vrot.lane.b32.xlu0 %v277, 113
        %v287 = vpop.permute.xlu0 %286
        %288 = vrot.lane.b32.xlu0 %v278, 113
        %v289 = vpop.permute.xlu0 %288
        %vm290 = vcmp.lt.s32.totalorder %v247, 113
        %v291 = vsel %vm290, %v287, %v289
        %v292 = vsel %vm290, %v289, %v287
        %v293 = vsel %vm273, 1, 0
        %v294 = vsel %vm274, 1, 0
        %vm295 = vcmp.eq.s32.totalorder %v293, 1
        %vm296 = vcmp.eq.s32.totalorder %v294, 1
        %v297 = vsel %vm295, %v291, %v285
        %v298 = vsel %vm296, %v292, %v284
        %299 = vrot.lane.b32.xlu0 %v277, 127
        %v300 = vpop.permute.xlu0 %299
        %301 = vrot.lane.b32.xlu0 %v278, 127
        %v302 = vpop.permute.xlu0 %301
        %vm303 = vcmp.lt.s32.totalorder %v247, 127
        %v304 = vsel %vm303, %v300, %v302
        %v305 = vsel %vm303, %v302, %v300
        %306 = vrot.lane.b32.xlu0 %v277, 15
        %v307 = vpop.permute.xlu0 %306
        %308 = vrot.lane.b32.xlu0 %v278, 15
        %v309 = vpop.permute.xlu0 %308
        %vm310 = vcmp.lt.s32.totalorder %v247, 15
        %v311 = vsel %vm310, %v307, %v309
        %v312 = vsel %vm310, %v309, %v307
        %v313 = vsel %vm275, 1, 0
        %v314 = vsel %vm276, 1, 0
        %vm315 = vcmp.eq.s32.totalorder %v313, 1
        %vm316 = vcmp.eq.s32.totalorder %v314, 1
        %v317 = vsel %vm315, %v312, %v304
        %v318 = vsel %vm316, %v311, %v305
        %319 = vrot.lane.b32.xlu0 %v297, 16
        %v320 = vpop.permute.xlu0 %319
        %321 = vrot.lane.b32.xlu0 %v298, 16
        %v322 = vpop.permute.xlu0 %321
        %vm323 = vcmp.lt.s32.totalorder %v247, 16
        %v324 = vsel %vm323, %v320, %v322
        %v325 = vsel %vm323, %v322, %v320
        %326 = vrot.lane.b32.xlu0 %v277, 16
        %v327 = vpop.permute.xlu0 %326
        %328 = vrot.lane.b32.xlu0 %v278, 16
        %v329 = vpop.permute.xlu0 %328
        %v330 = vsel %vm323, %v327, %v329
        %v331 = vsel %vm323, %v329, %v327
        %332 = vrot.lane.b32.xlu0 %v317, 16
        %v333 = vpop.permute.xlu0 %332
        %334 = vrot.lane.b32.xlu0 %v318, 16
        %v335 = vpop.permute.xlu0 %334
        %v336 = vsel %vm323, %v333, %v335
        %v337 = vsel %vm323, %v335, %v333
        %338 = vrot.lane.b32.xlu0 %v297, 112
        %v339 = vpop.permute.xlu0 %338
        %340 = vrot.lane.b32.xlu0 %v298, 112
        %v341 = vpop.permute.xlu0 %340
        %vm342 = vcmp.lt.s32.totalorder %v247, 112
        %v343 = vsel %vm342, %v339, %v341
        %v344 = vsel %vm342, %v341, %v339
        %345 = vrot.lane.b32.xlu0 %v277, 112
        %v346 = vpop.permute.xlu0 %345
        %347 = vrot.lane.b32.xlu0 %v278, 112
        %v348 = vpop.permute.xlu0 %347
        %v349 = vsel %vm342, %v346, %v348
        %v350 = vsel %vm342, %v348, %v346
        %351 = vrot.lane.b32.xlu0 %v317, 112
        %v352 = vpop.permute.xlu0 %351
        %353 = vrot.lane.b32.xlu0 %v318, 112
        %v354 = vpop.permute.xlu0 %353
        %v355 = vsel %vm342, %v352, %v354
        %v356 = vsel %vm342, %v354, %v352
        %v357 = vpack.c.bf16 %v331, %v325
        %v358 = vpack.c.bf16 %v330, %v324
        %v359 = vpack.c.bf16 %v297, %v337
        %v360 = vpack.c.bf16 %v298, %v336
        %v361 = vpack.c.bf16 %v317, %v277
        %v362 = vpack.c.bf16 %v318, %v278
        %v363 = vpack.c.bf16 %v349, %v343
        %v364 = vpack.c.bf16 %v350, %v344
        %v365 = vpack.c.bf16 %v355, %v355
        %v366 = vpack.c.bf16 %v356, %v356
        %v367 = vld [vmem:[%s1] sm:$0xf]
        %v368 = vld [vmem:[%s2] sm:$0xff]
        %370 = vset.pattern.permute.xlu0 0
        %371 = vperm.xlu0 %370, %v368
        %v372 = vpop.permute.xlu0 %371
        %vm374 = vcmask 588800
        %v376 = vsel %vm374, %v367, 0
        %vm378 = vcmask 1043456
        %v380 = vsel %vm378, %v365, 0
        %v383 = vsel %vm378, %v366, 0
        %385 = vmatpush.bf16.msra.mxu0 0
        %386 = vmatpush.bf16.msra.mxu0 0
        %387 = vmatpush.bf16.msra.mxu0 0
        %388 = vmatpush.bf16.msra.mxu0 %v380
        %389 = vmatpush.bf16.msra.mxu0 %v363
        %390 = vmatpush.bf16.msra.mxu0 %v361
        %391 = vmatpush.bf16.msra.mxu0 %v359
        %392 = vmatpush.bf16.msra.mxu0 %v357
        %393 = vmatmul.bf16.gmra.mxu0 %v376
        %v394 = vpop.f32.mrf.mxu0
        %v395 = vadd.f32 %v372, %v394
        %v396 = vpop.f32.mrf.mxu0
        %397 = vdwg.mxu0
        %398 = vmatpush.bf16.msra.mxu0 0
        %399 = vmatpush.bf16.msra.mxu0 0
        %400 = vmatpush.bf16.msra.mxu0 0
        %401 = vmatpush.bf16.msra.mxu0 %v383
        %402 = vmatpush.bf16.msra.mxu0 %v364
        %403 = vmatpush.bf16.msra.mxu0 %v362
        %404 = vmatpush.bf16.msra.mxu0 %v360
        %405 = vmatpush.bf16.msra.mxu0 %v358
        %406 = vmatmul.bf16.gmra.mxu0 %v376
        %v407 = vpop.f32.mrf.mxu0
        %v408 = vadd.f32 %v372, %v407
        %v409 = vpop.f32.mrf.mxu0
        %410 = vdwg.mxu0
        %v411 = vmax.f32 %v395, 0.0
        %v412 = vmax.f32 %v408, 0.0
        %413 = vrot.lane.b32.xlu0 %v411, 1
        %v414 = vpop.permute.xlu0 %413
        %415 = vrot.lane.b32.xlu0 %v412, 1
        %v416 = vpop.permute.xlu0 %415
        %v417 = vsel %vm283, %v414, %v416
        %v418 = vsel %vm283, %v416, %v414
        %419 = vrot.lane.b32.xlu0 %v411, 113
        %v420 = vpop.permute.xlu0 %419
        %421 = vrot.lane.b32.xlu0 %v412, 113
        %v422 = vpop.permute.xlu0 %421
        %v423 = vsel %vm290, %v420, %v422
        %v424 = vsel %vm290, %v422, %v420
        %v425 = vsel %vm295, %v423, %v418
        %v426 = vsel %vm296, %v424, %v417
        %427 = vrot.lane.b32.xlu0 %v411, 127
        %v428 = vpop.permute.xlu0 %427
        %429 = vrot.lane.b32.xlu0 %v412, 127
        %v430 = vpop.permute.xlu0 %429
        %v431 = vsel %vm303, %v428, %v430
        %v432 = vsel %vm303, %v430, %v428
        %433 = vrot.lane.b32.xlu0 %v411, 15
        %v434 = vpop.permute.xlu0 %433
        %435 = vrot.lane.b32.xlu0 %v412, 15
        %v436 = vpop.permute.xlu0 %435
        %v437 = vsel %vm310, %v434, %v436
        %v438 = vsel %vm310, %v436, %v434
        %v439 = vsel %vm315, %v438, %v431
        %v440 = vsel %vm316, %v437, %v432
        %441 = vrot.lane.b32.xlu0 %v425, 16
        %v442 = vpop.permute.xlu0 %441
        %443 = vrot.lane.b32.xlu0 %v426, 16
        %v444 = vpop.permute.xlu0 %443
        %v445 = vsel %vm323, %v442, %v444
        %v446 = vsel %vm323, %v444, %v442
        %447 = vrot.lane.b32.xlu0 %v411, 16
        %v448 = vpop.permute.xlu0 %447
        %449 = vrot.lane.b32.xlu0 %v412, 16
        %v450 = vpop.permute.xlu0 %449
        %v451 = vsel %vm323, %v448, %v450
        %v452 = vsel %vm323, %v450, %v448
        %453 = vrot.lane.b32.xlu0 %v439, 16
        %v454 = vpop.permute.xlu0 %453
        %455 = vrot.lane.b32.xlu0 %v440, 16
        %v456 = vpop.permute.xlu0 %455
        %v457 = vsel %vm323, %v454, %v456
        %v458 = vsel %vm323, %v456, %v454
        %459 = vrot.lane.b32.xlu0 %v425, 112
        %v460 = vpop.permute.xlu0 %459
        %461 = vrot.lane.b32.xlu0 %v426, 112
        %v462 = vpop.permute.xlu0 %461
        %v463 = vsel %vm342, %v460, %v462
        %v464 = vsel %vm342, %v462, %v460
        %465 = vrot.lane.b32.xlu0 %v411, 112
        %v466 = vpop.permute.xlu0 %465
        %467 = vrot.lane.b32.xlu0 %v412, 112
        %v468 = vpop.permute.xlu0 %467
        %v469 = vsel %vm342, %v466, %v468
        %v470 = vsel %vm342, %v468, %v466
        %471 = vrot.lane.b32.xlu0 %v439, 112
        %v472 = vpop.permute.xlu0 %471
        %473 = vrot.lane.b32.xlu0 %v440, 112
        %v474 = vpop.permute.xlu0 %473
        %v475 = vsel %vm342, %v472, %v474
        %v476 = vsel %vm342, %v474, %v472
        %v477 = vpack.c.bf16 %v452, %v446
        %v478 = vpack.c.bf16 %v451, %v445
        %v479 = vpack.c.bf16 %v425, %v458
        %v480 = vpack.c.bf16 %v426, %v457
        %v481 = vpack.c.bf16 %v439, %v411
        %v482 = vpack.c.bf16 %v440, %v412
        %v483 = vpack.c.bf16 %v469, %v463
        %v484 = vpack.c.bf16 %v470, %v464
        %v485 = vpack.c.bf16 %v475, %v475
        %v486 = vpack.c.bf16 %v476, %v476
        %v487 = vld [vmem:[%s3] sm:$0xf]
        %v488 = vld [vmem:[%s4] sm:$0xff]
        %490 = vset.pattern.permute.xlu0 0
        %491 = vperm.xlu0 %490, %v488
        %v492 = vpop.permute.xlu0 %491
        %v495 = vsel %vm374, %v487, 0
        %v498 = vsel %vm378, %v485, 0
        %v501 = vsel %vm378, %v486, 0
        %503 = vmatpush.bf16.msra.mxu0 0
        %504 = vmatpush.bf16.msra.mxu0 0
        %505 = vmatpush.bf16.msra.mxu0 0
        %506 = vmatpush.bf16.msra.mxu0 %v498
        %507 = vmatpush.bf16.msra.mxu0 %v483
        %508 = vmatpush.bf16.msra.mxu0 %v481
        %509 = vmatpush.bf16.msra.mxu0 %v479
        %510 = vmatpush.bf16.msra.mxu0 %v477
        %511 = vmatmul.bf16.gmra.mxu0 %v495
        %v512 = vpop.f32.mrf.mxu0
        %v513 = vadd.f32 %v492, %v512
        %v514 = vpop.f32.mrf.mxu0
        %515 = vdwg.mxu0
        %516 = vmatpush.bf16.msra.mxu0 0
        %517 = vmatpush.bf16.msra.mxu0 0
        %518 = vmatpush.bf16.msra.mxu0 0
        %519 = vmatpush.bf16.msra.mxu0 %v501
        %520 = vmatpush.bf16.msra.mxu0 %v484
        %521 = vmatpush.bf16.msra.mxu0 %v482
        %522 = vmatpush.bf16.msra.mxu0 %v480
        %523 = vmatpush.bf16.msra.mxu0 %v478
        %524 = vmatmul.bf16.gmra.mxu0 %v495
        %v525 = vpop.f32.mrf.mxu0
        %v526 = vadd.f32 %v492, %v525
        %v527 = vpop.f32.mrf.mxu0
        %528 = vdwg.mxu0
        %v529 = vmax.f32 %v513, 0.0
        %v530 = vmax.f32 %v526, 0.0
        %531 = vst [vmem:[%s242] sm:$0xff] %v529
        %532 = vst [vmem:[%s242 + $0x8] sm:$0xff] %v530
        %s533 = sand.u32 %s140, 1
        %s534 = scalar_lea.sflag [#allocation4], %s533
        %s535 = sand.u32 %s140, 1
        %s536 = smul.addr %s535, 16
        %s537 = scalar_lea.vmem [#allocation5], %s536
        // Predicated region
        $region45: #{tpu_custom_call.1} parent=39 // pred_check
          %p538 = pneg %p150
        $region46: #{tpu_custom_call.1} parent=39 // pred_check_branch
          %540 = sbr.rel (%p538) target = $region48
        $region47: #{tpu_custom_call.1} parent=39 // pred_region
          %s541 = smul.u32 2, %s22
          %543 = vsyncadd %s534, 0
          %s544 = smul.addr %s541, 8
          %s545 = scalar_lea.hbm %s5, %s544
          %s547 = sshll.u32 %s537, 4
          %s548 = int_to_ptr.vmem [resolvable:$true] %s547
          %s549 = sshll.u32 %s545, 4
          %s550 = int_to_ptr.hbm [resolvable:$true] %s549
          %552 = dma.vmem_to_hbm [thread:$0]  %s548, 256, %s550, %s534
        $region48: #{tpu_custom_call.1} parent=39 // pred_fallthru
          _
      $region40: #{tpu_custom_call.1} parent=5 // pred_fallthru
        _
      %p553 = scmp.le.s32.totalorder 2, %s17
      // Predicated region
      $region49: #{tpu_custom_call.1} parent=5 // pred_check
        %p554 = pneg %p553
      $region50: #{tpu_custom_call.1} parent=5 // pred_check_branch
        %556 = sbr.rel (%p554) target = $region52
      $region51: #{tpu_custom_call.1} parent=5 // pred_region
        %s557 = ssub.s32 %s17, 2
        // Predicated region
        $region53: #{tpu_custom_call.1} parent=51 // pred_check
          %p558 = pneg %p156
        $region54: #{tpu_custom_call.1} parent=51 // pred_check_branch
          %560 = sbr.rel (%p558) target = $region56
        $region55: #{tpu_custom_call.1} parent=51 // pred_region
          %s561 = sand.u32 %s141, 1
          %s562 = scalar_lea.sflag [#allocation4], %s561
          %s563 = sand.u32 %s141, 1
          %s564 = smul.addr %s563, 16
          %s565 = scalar_lea.vmem [#allocation5], %s564
          %567 = dma.done %s562, 256
        $region56: #{tpu_custom_call.1} parent=51 // pred_fallthru
          _
      $region52: #{tpu_custom_call.1} parent=5 // pred_fallthru
        _
    $region6: #{tpu_custom_call.1} parent=1 // loop_footer
      %s21 = sadd.s32 1, %s17
    $region7: #{tpu_custom_call.1} parent=1 // loop_footer_branch
      %16 = sbr.rel target = $region3
    $region8: #{tpu_custom_call.1} parent=1 // loop_exit
      _
    %568 = vsyncpa [#allocation3], 1
    %s569 = scalar_lea.sflag [#allocation3], 1
    %570 = vsyncpa %s569, 1
    %571 = vsyncpa [#allocation4], 1
    %s572 = scalar_lea.sflag [#allocation4], 1
    %573 = vsyncpa %s572, 1

</llo_original>
